<compile_context>
chip_gen: v7x
topology: tpu7x:2x2x1
jax: 0.10.0
libtpu: 0.0.40
codegen_flags: <defaults>
</compile_context>

<pallas_src>
import functools

import jax
import jax.numpy as jnp
from jax import lax
from jax.experimental import pallas as pl
from jax.experimental.pallas import tpu as pltpu

FORCE_MAG = 100.0
DT = 0.05
LANES = 128
_PALLAS_MIN_BATCH = 4096  # below this, plain jnp (XLA fusion) is strictly faster


# --------------------------------------------------------------------------
# Shared element-wise dynamics (used by both kernels).
# --------------------------------------------------------------------------
def _dynamics(gravity, inv_tm, pml_inv_tm, inv_length, mp_tm,
              x, dx, cos_th, sin_th, dth, u, renormalize):
    u = jnp.clip(u, -FORCE_MAG, FORCE_MAG)

    cart_in = u * inv_tm + pml_inv_tm * (dth * dth) * sin_th
    denom = 4.0 / 3.0 - mp_tm * (cos_th * cos_th)
    r = pl.reciprocal(denom, approx=True)
    r = r * (2.0 - denom * r)  # one Newton step -> ~f32 accuracy (VALU filler)
    th_acc = (gravity * sin_th - cos_th * cart_in) * inv_length * r
    xacc = cart_in - pml_inv_tm * th_acc * cos_th

    if renormalize:
        # Matches the reference's implicit atan2 renormalization.
        nrm2 = cos_th * cos_th + sin_th * sin_th
        inv_r = lax.rsqrt(jnp.maximum(nrm2, 1e-30))  # guard padded (0,0) lanes
        cn = cos_th * inv_r
        sn = sin_th * inv_r
    else:
        cn, sn = cos_th, sin_th

    # cos/sin(th + dt*dth) via angle addition (no atan2).
    dphi = DT * dth
    c_d = jnp.cos(dphi)
    s_d = jnp.sin(dphi)

    return (x + DT * dx,
            dx + DT * xacc,
            cn * c_d - sn * s_d,
            sn * c_d + cn * s_d,
            dth + DT * th_acc)


# --------------------------------------------------------------------------
# Kernels
# --------------------------------------------------------------------------
def _cartpole_step_kernel(scalars_ref, in_ref, out_ref, *, renormalize):
    # Hoisted scalars (SMEM, scalar prefetch):
    gravity = scalars_ref[0]      # g
    inv_tm = scalars_ref[1]       # 1 / total_mass
    pml_inv_tm = scalars_ref[2]   # polemass_length / total_mass
    inv_length = scalars_ref[3]   # 1 / length
    mp_tm = scalars_ref[4]        # masspole / total_mass

    # in_ref: (6, tile_r, 128) -> [x, dx, cos_th, sin_th, dth, u]
    nx, ndx, nc, ns, ndth = _dynamics(
        gravity, inv_tm, pml_inv_tm, inv_length, mp_tm,
        in_ref[0], in_ref[1], in_ref[2], in_ref[3], in_ref[4], in_ref[5],
        renormalize)

    out_ref[0] = nx
    out_ref[1] = ndx
    out_ref[2] = nc
    out_ref[3] = ns
    out_ref[4] = ndth


def _cartpole_rollout_kernel(scalars_ref, state0_ref, u_ref, traj_ref, st,
                             *, renormalize):
    # grid = (row_tiles [parallel], T [arbitrary]); state stays resident in
    # VMEM scratch `st` across the whole time axis.
    t = pl.program_id(1)

    @pl.when(t == 0)
    def _():
        st[...] = state0_ref[...]

    gravity = scalars_ref[0]
    inv_tm = scalars_ref[1]
    pml_inv_tm = scalars_ref[2]
    inv_length = scalars_ref[3]
    mp_tm = scalars_ref[4]

    nx, ndx, nc, ns, ndth = _dynamics(
        gravity, inv_tm, pml_inv_tm, inv_length, mp_tm,
        st[0], st[1], st[2], st[3], st[4], u_ref[0],
        renormalize)

    st[0] = nx
    st[1] = ndx
    st[2] = nc
    st[3] = ns
    st[4] = ndth
    traj_ref[0] = st[...]


# --------------------------------------------------------------------------
# Layout helpers
# --------------------------------------------------------------------------
def _round_up(n, m):
    return ((n + m - 1) // m) * m


def _tile_layout(batch, tile_rows):
    """num_tiles first, then tile_r, so padding is <= 8*num_tiles rows."""
    rows_min = max(1, pl.cdiv(batch, LANES))
    rows8 = _round_up(rows_min, 8)                 # sublane alignment
    tile_cap = max(8, (tile_rows // 8) * 8)
    num_tiles = pl.cdiv(rows8, tile_cap)
    if num_tiles == 1 and rows8 >= 16:
        num_tiles = 2                              # engage both TCs on v7x
    tile_r = _round_up(pl.cdiv(rows8, num_tiles), 8)
    rows = tile_r * num_tiles
    return rows, tile_r, num_tiles


def _to_cm(arr_bc, rows):
    """(B, C) f32 -> component-major (C, rows, 128) with zero padding."""
    b = arr_bc.shape[0]
    pad = rows * LANES - b
    return jnp.pad(arr_bc.T, ((0, 0), (0, pad))).reshape(-1, rows, LANES)


def _from_cm(arr_cm, batch):
    """(C, rows, 128) -> (B, C)."""
    c = arr_cm.shape[0]
    return arr_cm.reshape(c, -1)[:, :batch].T


def _hoisted_scalars(params):
    params = jnp.asarray(params, dtype=jnp.float32)
    gravity, masscart, masspole, length = (params[0], params[1],
                                           params[2], params[3])
    total_mass = masscart + masspole
    polemass_length = masspole * length
    return jnp.stack([
        gravity,
        1.0 / total_mass,
        polemass_length / total_mass,
        1.0 / length,
        masspole / total_mass,
    ])


# --------------------------------------------------------------------------
# Public entry points
# --------------------------------------------------------------------------
def _jnp_forward(params, state, u):
    """Plain-jnp CartpoleDx.forward (module semantics, exact divides/atan2)."""
    params = jnp.asarray(params, dtype=jnp.float32)
    gravity, masscart, masspole, length = (params[0], params[1],
                                           params[2], params[3])
    total_mass = masspole + masscart
    polemass_length = masspole * length
    uc = jnp.clip(u[:, 0], -FORCE_MAG, FORCE_MAG)
    x, dx, cos_th, sin_th, dth = [state[:, i] for i in range(5)]
    th = jnp.arctan2(sin_th, cos_th)
    cart_in = (uc + polemass_length * dth ** 2 * sin_th) / total_mass
    th_acc = (gravity * sin_th - cos_th * cart_in) / (
        length * (4.0 / 3.0 - masspole * cos_th ** 2 / total_mass))
    xacc = cart_in - polemass_length * th_acc * cos_th / total_mass
    x = x + DT * dx
    dx = dx + DT * xacc
    th = th + DT * dth
    dth = dth + DT * th_acc
    return jnp.stack((x, dx, jnp.cos(th), jnp.sin(th), dth), axis=1)


def cartpole_dx_forward(params, state, u, *, tile_rows=1024, renormalize=True,
                        prefer_pallas=None, vmem_limit_bytes=None):
    """JAX/Pallas equivalent of CartpoleDx.forward.

    params: (4,) f32  (gravity, masscart, masspole, length)
    state:  (B, 5) or (5,) f32;  u: (B, n_ctrl) or (n_ctrl,) f32
    prefer_pallas: None -> auto (plain jnp below a few thousand batch elems).
    v5e: keep tile_rows <= 1024 unless vmem_limit_bytes is raised.
    v6e: tile_rows up to 2048 is fine; 4096 needs vmem_limit_bytes ~64 MiB.
    v7x: stay at 1024-2048 (only 64 MiB physical VMEM).
    """
    squeeze = state.ndim == 1
    if squeeze:
        state = state[None, :]
        u = u[None, :]
    state = state.astype(jnp.float32)
    u = u.astype(jnp.float32)
    batch = state.shape[0]

    use_pallas = prefer_pallas if prefer_pallas is not None else (
        batch >= _PALLAS_MIN_BATCH)
    if not use_pallas:
        out = _jnp_forward(params, state, u)
        return out[0] if squeeze else out

    scalars = _hoisted_scalars(params)
    rows, tile_r, num_tiles = _tile_layout(batch, tile_rows)

    # TODO(synk): for MPC rollouts keep caller data component-major across
    # steps (or use cartpole_dx_rollout below) so these relayouts disappear.
    in_cm = _to_cm(jnp.concatenate([state, u[:, 0:1]], axis=1), rows)  # (6,rows,128)

    kernel = functools.partial(_cartpole_step_kernel, renormalize=renormalize)
    out_cm = pl.pallas_call(
        kernel,
        out_shape=jax.ShapeDtypeStruct((5, rows, LANES), jnp.float32),
        grid_spec=pltpu.PrefetchScalarGridSpec(
            num_scalar_prefetch=1,
            grid=(num_tiles,),
            in_specs=[pl.BlockSpec((6, tile_r, LANES), lambda i, s: (0, i, 0))],
            out_specs=pl.BlockSpec((5, tile_r, LANES), lambda i, s: (0, i, 0)),
        ),
        compiler_params=pltpu.CompilerParams(
            dimension_semantics=("parallel",),
            vmem_limit_bytes=vmem_limit_bytes,
        ),
    )(scalars, in_cm)

    out = _from_cm(out_cm, batch)
    return out[0] if squeeze else out


def cartpole_dx_rollout(params, state0, us, *, tile_rows=1024, renormalize=True,
                        vmem_limit_bytes=None):
    """Fused T-step rollout: state stays VMEM-resident across the time axis.

    state0: (B, 5) f32;  us: (T, B, n_ctrl) f32  ->  trajectory (T, B, 5).
    """
    state0 = state0.astype(jnp.float32)
    us = us.astype(jnp.float32)
    T = us.shape[0]
    batch = state0.shape[0]

    scalars = _hoisted_scalars(params)
    rows, tile_r, num_tiles = _tile_layout(batch, tile_rows)

    state_cm = _to_cm(state0, rows)          # (5, rows, 128)
    u_cm = _to_cm(us[:, :, 0].T, rows)       # (T, rows, 128)

    kernel = functools.partial(_cartpole_rollout_kernel, renormalize=renormalize)
    traj_cm = pl.pallas_call(
        kernel,
        out_shape=jax.ShapeDtypeStruct((T, 5, rows, LANES), jnp.float32),
        grid_spec=pltpu.PrefetchScalarGridSpec(
            num_scalar_prefetch=1,
            grid=(num_tiles, T),
            in_specs=[
                # state0: same block for every t -> stays resident, one DMA.
                pl.BlockSpec((5, tile_r, LANES), lambda i, t, s: (0, i, 0)),
                pl.BlockSpec((1, tile_r, LANES), lambda i, t, s: (t, i, 0)),
            ],
            out_specs=pl.BlockSpec((1, 5, tile_r, LANES),
                                   lambda i, t, s: (t, 0, i, 0)),
            scratch_shapes=[pltpu.VMEM((5, tile_r, LANES), jnp.float32)],
        ),
        compiler_params=pltpu.CompilerParams(
            dimension_semantics=("parallel", "arbitrary"),
            vmem_limit_bytes=vmem_limit_bytes,
        ),
    )(scalars, state_cm, u_cm)

    traj = traj_cm.reshape(T, 5, rows * LANES)[:, :, :batch]
    return jnp.transpose(traj, (0, 2, 1))    # (T, B, 5)


# --------------------------------------------------------------------------
# Self-test
# --------------------------------------------------------------------------
if __name__ == "__main__":
    # Default params from the module __init__: (gravity, masscart, masspole, length)
    params = jnp.array([9.8, 1.0, 0.1, 0.5], dtype=jnp.float32)

    key = jax.random.PRNGKey(0)
    k1, k2, k3 = jax.random.split(key, 3)
    B = 8
    state = jax.random.normal(k1, (B, 5), dtype=jnp.float32)
    # Make (cos_th, sin_th) a valid unit pair, like a real cartpole state.
    th0 = jax.random.uniform(k2, (B,), minval=-3.0, maxval=3.0, dtype=jnp.float32)
    state = state.at[:, 2].set(jnp.cos(th0)).at[:, 3].set(jnp.sin(th0))
    u = 50.0 * jax.random.normal(k3, (B, 1), dtype=jnp.float32)

    ref = _jnp_forward(params, state, u)

    # 1) Single-step Pallas kernel (forced — the auto path would use jnp at B=8).
    out = jax.block_until_ready(
        cartpole_dx_forward(params, state, u, prefer_pallas=True))
    assert out.shape == (B, 5)
    assert jnp.allclose(out, ref, atol=1e-4, rtol=1e-4), (out, ref)

    # 2) Small-B auto fast path (plain jnp) must agree with the reference too.
    out_fast = jax.block_until_ready(cartpole_dx_forward(params, state, u))
    assert jnp.allclose(out_fast, ref, atol=1e-5, rtol=1e-5)

    # 3) Fused multi-step rollout kernel (state VMEM-resident across T steps).
    T = 4
    us = 50.0 * jax.random.normal(jax.random.PRNGKey(1), (T, B, 1),
                                  dtype=jnp.float32)
    traj = jax.block_until_ready(cartpole_dx_rollout(params, state, us))
    assert traj.shape == (T, B, 5)
    s_ref = state
    for t in range(T):
        s_ref = _jnp_forward(params, s_ref, us[t])
        assert jnp.allclose(traj[t], s_ref, atol=1e-4, rtol=1e-4), t

    print("KERNEL_OK")
</pallas_src>

<mosaic_0001>
module attributes {stable_mosaic.version = 11 : i64} {
  func.func @_cartpole_step_kernel(%arg0: i32, %arg1: memref<5xf32, #tpu.memory_space<smem>>, %arg2: memref<6x8x128xf32, #tpu.memory_space<vmem>>, %arg3: memref<5x8x128xf32, #tpu.memory_space<vmem>>) attributes {dimension_semantics = [#tpu.dimension_semantics<parallel>], iteration_bounds = array<i64: 1>, scalar_prefetch = 1 : i64, scratch_operands = 0 : i64, tpu.core_type = #tpu.core_type<tc>, window_params = [{transform_indices = @transform_0, window_bounds = array<i64: 6, 8, 128>}, {transform_indices = @transform_1, window_bounds = array<i64: 5, 8, 128>}]} {
    %c0 = arith.constant 0 : index
    %0 = memref.load %arg1[%c0] : memref<5xf32, #tpu.memory_space<smem>>
    %c1 = arith.constant 1 : index
    %1 = memref.load %arg1[%c1] : memref<5xf32, #tpu.memory_space<smem>>
    %c2 = arith.constant 2 : index
    %2 = memref.load %arg1[%c2] : memref<5xf32, #tpu.memory_space<smem>>
    %c3 = arith.constant 3 : index
    %3 = memref.load %arg1[%c3] : memref<5xf32, #tpu.memory_space<smem>>
    %c4 = arith.constant 4 : index
    %4 = memref.load %arg1[%c4] : memref<5xf32, #tpu.memory_space<smem>>
    %c0_0 = arith.constant 0 : index
    %c0_1 = arith.constant 0 : index
    %c0_2 = arith.constant 0 : index
    %5 = vector.load %arg2[%c0_0, %c0_1, %c0_2] : memref<6x8x128xf32, #tpu.memory_space<vmem>>, vector<1x8x128xf32>
    %6 = vector.shape_cast %5 : vector<1x8x128xf32> to vector<8x128xf32>
    %c1_3 = arith.constant 1 : index
    %c0_4 = arith.constant 0 : index
    %c0_5 = arith.constant 0 : index
    %7 = vector.load %arg2[%c1_3, %c0_4, %c0_5] : memref<6x8x128xf32, #tpu.memory_space<vmem>>, vector<1x8x128xf32>
    %8 = vector.shape_cast %7 : vector<1x8x128xf32> to vector<8x128xf32>
    %c2_6 = arith.constant 2 : index
    %c0_7 = arith.constant 0 : index
    %c0_8 = arith.constant 0 : index
    %9 = vector.load %arg2[%c2_6, %c0_7, %c0_8] : memref<6x8x128xf32, #tpu.memory_space<vmem>>, vector<1x8x128xf32>
    %10 = vector.shape_cast %9 : vector<1x8x128xf32> to vector<8x128xf32>
    %c3_9 = arith.constant 3 : index
    %c0_10 = arith.constant 0 : index
    %c0_11 = arith.constant 0 : index
    %11 = vector.load %arg2[%c3_9, %c0_10, %c0_11] : memref<6x8x128xf32, #tpu.memory_space<vmem>>, vector<1x8x128xf32>
    %12 = vector.shape_cast %11 : vector<1x8x128xf32> to vector<8x128xf32>
    %c4_12 = arith.constant 4 : index
    %c0_13 = arith.constant 0 : index
    %c0_14 = arith.constant 0 : index
    %13 = vector.load %arg2[%c4_12, %c0_13, %c0_14] : memref<6x8x128xf32, #tpu.memory_space<vmem>>, vector<1x8x128xf32>
    %14 = vector.shape_cast %13 : vector<1x8x128xf32> to vector<8x128xf32>
    %c5 = arith.constant 5 : index
    %c0_15 = arith.constant 0 : index
    %c0_16 = arith.constant 0 : index
    %15 = vector.load %arg2[%c5, %c0_15, %c0_16] : memref<6x8x128xf32, #tpu.memory_space<vmem>>, vector<1x8x128xf32>
    %16 = vector.shape_cast %15 : vector<1x8x128xf32> to vector<8x128xf32>
    %cst = arith.constant -1.000000e+02 : f32
    %cst_17 = arith.constant 1.000000e+02 : f32
    %17 = vector.broadcast %cst : f32 to vector<8x128xf32>
    %18 = arith.maximumf %17, %16 : vector<8x128xf32>
    %19 = vector.broadcast %cst_17 : f32 to vector<8x128xf32>
    %20 = arith.minimumf %19, %18 : vector<8x128xf32>
    %21 = vector.broadcast %1 : f32 to vector<8x128xf32>
    %22 = arith.mulf %20, %21 : vector<8x128xf32>
    %23 = arith.mulf %14, %14 : vector<8x128xf32>
    %24 = vector.broadcast %2 : f32 to vector<8x128xf32>
    %25 = arith.mulf %24, %23 : vector<8x128xf32>
    %26 = arith.mulf %25, %12 : vector<8x128xf32>
    %27 = arith.addf %22, %26 : vector<8x128xf32>
    %28 = arith.mulf %10, %10 : vector<8x128xf32>
    %29 = vector.broadcast %4 : f32 to vector<8x128xf32>
    %30 = arith.mulf %29, %28 : vector<8x128xf32>
    %cst_18 = arith.constant 1.33333337 : f32
    %31 = vector.broadcast %cst_18 : f32 to vector<8x128xf32>
    %32 = arith.subf %31, %30 : vector<8x128xf32>
    %33 = tpu.reciprocal %32 {approx = true} : vector<8x128xf32> -> vector<8x128xf32>
    %34 = arith.mulf %32, %33 : vector<8x128xf32>
    %cst_19 = arith.constant 2.000000e+00 : f32
    %35 = vector.broadcast %cst_19 : f32 to vector<8x128xf32>
    %36 = arith.subf %35, %34 : vector<8x128xf32>
    %37 = arith.mulf %33, %36 : vector<8x128xf32>
    %38 = vector.broadcast %0 : f32 to vector<8x128xf32>
    %39 = arith.mulf %38, %12 : vector<8x128xf32>
    %40 = arith.mulf %10, %27 : vector<8x128xf32>
    %41 = arith.subf %39, %40 : vector<8x128xf32>
    %42 = vector.broadcast %3 : f32 to vector<8x128xf32>
    %43 = arith.mulf %41, %42 : vector<8x128xf32>
    %44 = arith.mulf %43, %37 : vector<8x128xf32>
    %45 = vector.broadcast %2 : f32 to vector<8x128xf32>
    %46 = arith.mulf %45, %44 : vector<8x128xf32>
    %47 = arith.mulf %46, %10 : vector<8x128xf32>
    %48 = arith.subf %27, %47 : vector<8x128xf32>
    %49 = arith.mulf %10, %10 : vector<8x128xf32>
    %50 = arith.mulf %12, %12 : vector<8x128xf32>
    %51 = arith.addf %49, %50 : vector<8x128xf32>
    %cst_20 = arith.constant 1.000000e-30 : f32
    %52 = vector.broadcast %cst_20 : f32 to vector<8x128xf32>
    %53 = arith.maximumf %51, %52 : vector<8x128xf32>
    %54 = math.rsqrt %53 : vector<8x128xf32>
    %55 = arith.mulf %10, %54 : vector<8x128xf32>
    %56 = arith.mulf %12, %54 : vector<8x128xf32>
    %cst_21 = arith.constant 5.000000e-02 : f32
    %57 = vector.broadcast %cst_21 : f32 to vector<8x128xf32>
    %58 = arith.mulf %57, %14 : vector<8x128xf32>
    %59 = math.cos %58 : vector<8x128xf32>
    %60 = math.sin %58 : vector<8x128xf32>
    %cst_22 = arith.constant 5.000000e-02 : f32
    %61 = vector.broadcast %cst_22 : f32 to vector<8x128xf32>
    %62 = arith.mulf %61, %8 : vector<8x128xf32>
    %63 = arith.addf %6, %62 : vector<8x128xf32>
    %cst_23 = arith.constant 5.000000e-02 : f32
    %64 = vector.broadcast %cst_23 : f32 to vector<8x128xf32>
    %65 = arith.mulf %64, %48 : vector<8x128xf32>
    %66 = arith.addf %8, %65 : vector<8x128xf32>
    %67 = arith.mulf %55, %59 : vector<8x128xf32>
    %68 = arith.mulf %56, %60 : vector<8x128xf32>
    %69 = arith.subf %67, %68 : vector<8x128xf32>
    %70 = arith.mulf %56, %59 : vector<8x128xf32>
    %71 = arith.mulf %55, %60 : vector<8x128xf32>
    %72 = arith.addf %70, %71 : vector<8x128xf32>
    %cst_24 = arith.constant 5.000000e-02 : f32
    %73 = vector.broadcast %cst_24 : f32 to vector<8x128xf32>
    %74 = arith.mulf %73, %44 : vector<8x128xf32>
    %75 = arith.addf %14, %74 : vector<8x128xf32>
    %c0_25 = arith.constant 0 : index
    %c0_26 = arith.constant 0 : index
    %c0_27 = arith.constant 0 : index
    %76 = vector.load %arg3[%c0_25, %c0_26, %c0_27] : memref<5x8x128xf32, #tpu.memory_space<vmem>>, vector<1x8x128xf32>
    %77 = vector.shape_cast %76 : vector<1x8x128xf32> to vector<8x128xf32>
    %78 = vector.shape_cast %63 : vector<8x128xf32> to vector<1x8x128xf32>
    tpu.vector_store %arg3[%c0_25, %c0_26, %c0_27], %78 {strides = array<i32>} : memref<5x8x128xf32, #tpu.memory_space<vmem>>, vector<1x8x128xf32>,
    %c1_28 = arith.constant 1 : index
    %c0_29 = arith.constant 0 : index
    %c0_30 = arith.constant 0 : index
    %79 = vector.load %arg3[%c1_28, %c0_29, %c0_30] : memref<5x8x128xf32, #tpu.memory_space<vmem>>, vector<1x8x128xf32>
    %80 = vector.shape_cast %79 : vector<1x8x128xf32> to vector<8x128xf32>
    %81 = vector.shape_cast %66 : vector<8x128xf32> to vector<1x8x128xf32>
    tpu.vector_store %arg3[%c1_28, %c0_29, %c0_30], %81 {strides = array<i32>} : memref<5x8x128xf32, #tpu.memory_space<vmem>>, vector<1x8x128xf32>,
    %c2_31 = arith.constant 2 : index
    %c0_32 = arith.constant 0 : index
    %c0_33 = arith.constant 0 : index
    %82 = vector.load %arg3[%c2_31, %c0_32, %c0_33] : memref<5x8x128xf32, #tpu.memory_space<vmem>>, vector<1x8x128xf32>
    %83 = vector.shape_cast %82 : vector<1x8x128xf32> to vector<8x128xf32>
    %84 = vector.shape_cast %69 : vector<8x128xf32> to vector<1x8x128xf32>
    tpu.vector_store %arg3[%c2_31, %c0_32, %c0_33], %84 {strides = array<i32>} : memref<5x8x128xf32, #tpu.memory_space<vmem>>, vector<1x8x128xf32>,
    %c3_34 = arith.constant 3 : index
    %c0_35 = arith.constant 0 : index
    %c0_36 = arith.constant 0 : index
    %85 = vector.load %arg3[%c3_34, %c0_35, %c0_36] : memref<5x8x128xf32, #tpu.memory_space<vmem>>, vector<1x8x128xf32>
    %86 = vector.shape_cast %85 : vector<1x8x128xf32> to vector<8x128xf32>
    %87 = vector.shape_cast %72 : vector<8x128xf32> to vector<1x8x128xf32>
    tpu.vector_store %arg3[%c3_34, %c0_35, %c0_36], %87 {strides = array<i32>} : memref<5x8x128xf32, #tpu.memory_space<vmem>>, vector<1x8x128xf32>,
    %c4_37 = arith.constant 4 : index
    %c0_38 = arith.constant 0 : index
    %c0_39 = arith.constant 0 : index
    %88 = vector.load %arg3[%c4_37, %c0_38, %c0_39] : memref<5x8x128xf32, #tpu.memory_space<vmem>>, vector<1x8x128xf32>
    %89 = vector.shape_cast %88 : vector<1x8x128xf32> to vector<8x128xf32>
    %90 = vector.shape_cast %75 : vector<8x128xf32> to vector<1x8x128xf32>
    tpu.vector_store %arg3[%c4_37, %c0_38, %c0_39], %90 {strides = array<i32>} : memref<5x8x128xf32, #tpu.memory_space<vmem>>, vector<1x8x128xf32>,
    return
  }
  func.func @transform_0(%arg0: i32, %arg1: memref<5xf32, #tpu.memory_space<smem>>) -> (i32, i32, i32) {
    %c0_i32 = arith.constant 0 : i32
    %c0_i32_0 = arith.constant 0 : i32
    %c0_i32_1 = arith.constant 0 : i32
    return %c0_i32, %arg0, %c0_i32_0 : i32, i32, i32
  }
  func.func @transform_1(%arg0: i32, %arg1: memref<5xf32, #tpu.memory_space<smem>>) -> (i32, i32, i32) {
    %c0_i32 = arith.constant 0 : i32
    %c0_i32_0 = arith.constant 0 : i32
    %c0_i32_1 = arith.constant 0 : i32
    return %c0_i32, %arg0, %c0_i32_0 : i32, i32, i32
  }
}

</mosaic_0001>

<llo_original>
// kernel: tpu_custom_call.1
$region0: #{tpu_custom_call.1}
  #allocation0 [shape = 'u32[]', space=smem, size = 0x4, offset = 0x4, fixed_abs, tag = 'smem constant byte address 0x4 - core index']
  #allocation1 [shape = 'u32[144,128]{1,0:T(1,128)}', space=vmem, size = 0x12000, scoped, tag = 'internal scratch']
  #allocation2 [shape = 's32[1]{0}', space=sflag, size = 0x4, scoped, tag = 'scoped memory for tpu_custom_call.1']
  #allocation3 [shape = 'u8[512]{0}', space=smem, size = 0x200, scoped, tag = 'prefetched SMEM operand 0']
  %s0 = inlined_call_operand.hbm [shape: f32[5], index: 0, kind: input, shape index: {}]
  %s1 = inlined_call_operand.hbm [shape: f32[6,8,128], index: 1, kind: input, shape index: {}]
  %s2 = inlined_call_operand.hbm [shape: f32[5,8,128], index: 2, kind: output, shape index: {}]
  %s3 = sld [smem:[#allocation0]]
  $region18: #{tpu_custom_call.1} parent=0
    _
  %s5 = ssub.s32 1, %s3
  %s6 = scalar_select 0, %s5, %s3
  %8 = dma.hbm_to_smem %s0, 16, [#allocation3], [#allocation2]
  %9 = dma.done [#allocation2], 16
  %10 = sfence
  $region1: #{tpu_custom_call.1} parent=0
    #allocation4 [shape = 'u8[24576]{0}', space=vmem, size = 0x6000, scoped, tag = 'input window, operand 1, single buffered']
    #allocation5 [shape = 's32[1]{0}', space=sflag, size = 0x4, scoped, tag = 'scoped memory for tpu_custom_call.1']
    #allocation6 [shape = 's32[1]{0}', space=sflag, size = 0x4, scoped, tag = 'scoped memory for tpu_custom_call.1']
    #allocation7 [shape = 'u8[20480]{0}', space=vmem, size = 0x5000, scoped, tag = 'output window, operand 0, single buffered']
    %11 = vsyncpa [#allocation5], 0
    %12 = vsyncpa [#allocation6], 0
    // Predicated region
    $region2: #{tpu_custom_call.1} parent=1 // pred_check
      _
    $region3: #{tpu_custom_call.1} parent=1 // pred_check_branch
      %14 = sbr.rel (0) target = $region5
    $region4: #{tpu_custom_call.1} parent=1 // pred_region
      %s16 = ssub.s32 768, 768
      %17 = vsyncadd [#allocation5], %s16
      %s18 = sshll.u32 [#allocation4], 4
      %s19 = int_to_ptr.vmem [resolvable:$true] %s18
      %24 = dma.hbm_to_vmem [thread:$0]  %s1, 768, %s19, [#allocation5], 128, 128, 8
    $region5: #{tpu_custom_call.1} parent=1 // pred_fallthru
      _
    // Predicated region
    $region6: #{tpu_custom_call.1} parent=1 // pred_check
      _
    $region7: #{tpu_custom_call.1} parent=1 // pred_check_branch
      %26 = sbr.rel (0) target = $region9
    $region8: #{tpu_custom_call.1} parent=1 // pred_region
      %27 = dma.done [#allocation5], 768
    $region9: #{tpu_custom_call.1} parent=1 // pred_fallthru
      _
    %s28 = sld [smem:[#allocation3]]
    %s29 = sld [smem:[#allocation3 + $0x1]]
    %s30 = sld [smem:[#allocation3 + $0x2]]
    %s31 = sld [smem:[#allocation3 + $0x3]]
    %s32 = sld [smem:[#allocation3 + $0x4]]
    %v33 = vld [vmem:[#allocation4] sm:$0xff]
    %s34 = scalar_lea.vmem [#allocation4], 8
    %v35 = vld [vmem:[%s34] sm:$0xff]
    %s36 = scalar_lea.vmem [#allocation4], 16
    %v37 = vld [vmem:[%s36] sm:$0xff]
    %s38 = scalar_lea.vmem [#allocation4], 24
    %v39 = vld [vmem:[%s38] sm:$0xff]
    %s40 = scalar_lea.vmem [#allocation4], 32
    %v41 = vld [vmem:[%s40] sm:$0xff]
    %s42 = scalar_lea.vmem [#allocation4], 40
    %v43 = vld [vmem:[%s42] sm:$0xff]
    %v44 = vmax.f32 %v43, -100.0
    %v45 = vmin.f32 %v44, 100.0
    %v46 = vstv %s29
    %v47 = vmul.f32 %v45, %v46
    %v48 = vmul.f32 %v41, %v41
    %v49 = vstv %s30
    %v50 = vmul.f32 %v49, %v48
    %v51 = vmul.f32 %v50, %v39
    %v52 = vadd.f32 %v47, %v51
    %v53 = vmul.f32 %v37, %v37
    %v54 = vstv %s32
    %v55 = vmul.f32 %v54, %v53
    %v56 = vsub.f32 1.3333334, %v55
    %v57 = vrcp.pop %v56
    %v58 = vmul.f32 %v56, %v57
    %v59 = vsub.f32 2.0, %v58
    %v60 = vmul.f32 %v57, %v59
    %v61 = vstv %s28
    %v62 = vmul.f32 %v61, %v39
    %v63 = vmul.f32 %v37, %v52
    %v64 = vsub.f32 %v62, %v63
    %v65 = vstv %s31
    %v66 = vmul.f32 %v64, %v65
    %v67 = vmul.f32 %v66, %v60
    %v68 = vmul.f32 %v49, %v67
    %v69 = vmul.f32 %v68, %v37
    %v70 = vsub.f32 %v52, %v69
    %v71 = vmul.f32 %v39, %v39
    %v72 = vadd.f32 %v53, %v71
    %v73 = vmax.f32 %v72, 1e-30
    %v74 = vrsqrt.pop %v73
    %v75 = vmul.f32 %v37, %v74
    %v76 = vmul.f32 %v39, %v74
    %v77 = vmul.f32 %v41, 0.05
    %v78 = vand.u32 2147483647, %v77
    %vm79 = vcmp.le.f32.partialorder %v78, 0.7853982
    %vm80 = vcmp.lt.s32.totalorder %v77, 0
    %v81 = vand.u32 %v77, 2139095040
    %v82 = vshrl.u32 %v81, 23
    %v83 = vsub.s32 %v82, 127
    %v84 = vand.u32 2147483647, %v77
    %v85 = vand.u32 %v84, 8388607
    %v86 = vor.u32 %v85, 8388608
    %v87 = vsub.s32 0, %v86
    %v88 = vadd.s32 %v83, 1
    %vm89 = vcmp.gt.s32.totalorder %v88, 0
    %v90 = vsel %vm89, %v88, 0
    %v91 = vshrl.u32 %v90, 5
    %v92 = vand.u32 %v90, 31
    %v93 = vsub.s32 32, %v92
    %v94 = vshrl.u32 683565275, %v93
    %v95 = vshll.u32 683565275, %v92
    %v96 = vshrl.u32 2475754826, %v93
    %v97 = vor.u32 %v95, %v96
    %v98 = vshll.u32 2475754826, %v92
    %v99 = vshrl.u32 2131351028, %v93
    %v100 = vor.u32 %v98, %v99
    %v101 = vshll.u32 2131351028, %v92
    %v102 = vshrl.u32 2102212464, %v93
    %v103 = vor.u32 %v101, %v102
    %v104 = vshll.u32 2102212464, %v92
    %v105 = vshrl.u32 920167782, %v93
    %v106 = vor.u32 %v104, %v105
    %v107 = vshll.u32 920167782, %v92
    %v108 = vshrl.u32 1326507024, %v93
    %v109 = vor.u32 %v107, %v108
    %vm110 = vcmp.lt.s32.totalorder %v91, 1
    %vm111 = vcmp.lt.s32.totalorder %v91, 2
    %vm112 = vcmp.lt.s32.totalorder %v91, 3
    %vm113 = vcmp.lt.s32.totalorder %v91, 4
    %v114 = vsel %vm110, %v94, %v97
    %v115 = vsel %vm113, %v103, 2102212464
    %v116 = vsel %vm112, %v100, %v115
    %v117 = vsel %vm111, %v114, %v116
    %v118 = vsel %vm110, %v97, %v100
    %v119 = vsel %vm113, %v106, 920167782
    %v120 = vsel %vm112, %v103, %v119
    %v121 = vsel %vm111, %v118, %v120
    %v122 = vsel %vm110, %v100, %v103
    %v123 = vsel %vm113, %v109, 1326507024
    %v124 = vsel %vm112, %v106, %v123
    %v125 = vsel %vm111, %v122, %v124
    %v126 = vshll.u32 %v86, 8
    %v127 = vmul.u32.u64.compose %v126, %v125
    %v128 = vextract.low.u32 %v127
    %v129 = vextract.high.u32 %v127
    %v130 = vmul.u32.u64.compose %v126, %v121
    %v131 = vextract.low.u32 %v130
    %v132 = vextract.high.u32 %v130
    %v133 = vmul.u32 %v126, %v117
    %v134 = vadd.s32 %v129, %v131
    %vm135 = vc.u32 %v129, %v131
    %v136 = vadd.s32 %v132, 1
    %v137 = vsel %vm135, %v136, %v132
    %v138 = vadd.s32 %v133, %v137
    %v139 = vadd.s32 %v138, 536870912
    %v140 = vshrl.u32 %v139, 30
    %v141 = vshll.u32 %v140, 30
    %v142 = vsub.s32 %v138, %v141
    %vm143 = vcmp.lt.s32.totalorder %v142, 0
    %v144 = vsub.s32 0, %v142
    %v145 = vsel %vm143, %v144, %v142
    %v146 = vclz %v145
    %v147 = vsub.s32 %v146, 2
    %vm148 = vcmp.gt.s32.totalorder 0, %v147
    %v149 = vsel %vm148, 0, %v147
    %v150 = vsub.s32 32, %v149
    %v151 = vshll.u32 %v142, %v149
    %v152 = vshrl.u32 %v134, %v150
    %v153 = vor.u32 %v151, %v152
    %v154 = vsub.s32 4294967266, %v149
    %v155 = vadd.s32 %v154, 127
    %v156 = vshll.u32 %v155, 23
    %v157 = vor.u32 4788187, %v156
    %v158 = vand.u32 2147483647, %v157
    %v160 = vcvt.s32.f32 %v153
    %v161 = vmul.f32 %v160, %v158
    %v162 = vxor.u32 %v161, 2147483648
    %v163 = vsel %vm80, %v162, %v161
    %v164 = vsub.s32 4, %v140
    %v165 = vsel %vm80, %v164, %v140
    %v166 = vsel %vm79, %v77, %v163
    %v167 = vsel %vm79, 0, %v165
    %v168 = vcosq.f32.pop %v166
    %v169 = vsinq.f32.pop %v166
    %vm170 = vweird.f32 %v77
    %v171 = vand.u32 %v167, 3
    %vm172 = vcmp.lt.s32.totalorder %v171, 2
    %vm173 = vcmp.eq.s32.totalorder %v171, 0
    %v174 = vxor.u32 %v169, 2147483648
    %v175 = vsel %vm173, %v168, %v174
    %vm176 = vcmp.eq.s32.totalorder %v171, 2
    %v177 = vxor.u32 %v168, 2147483648
    %v178 = vsel %vm176, %v177, %v169
    %v179 = vsel %vm172, %v175, %v178
    %v180 = vsel %vm170, nan, %v179
    %v181 = vand.u32 2147483647, %v77
    %vm182 = vcmp.le.f32.partialorder %v181, 0.7853982
    %vm183 = vcmp.lt.s32.totalorder %v77, 0
    %v184 = vand.u32 %v77, 2139095040
    %v185 = vshrl.u32 %v184, 23
    %v186 = vsub.s32 %v185, 127
    %v187 = vand.u32 2147483647, %v77
    %v188 = vand.u32 %v187, 8388607
    %v189 = vor.u32 %v188, 8388608
    %v190 = vsub.s32 0, %v189
    %v191 = vadd.s32 %v186, 1
    %vm192 = vcmp.gt.s32.totalorder %v191, 0
    %v193 = vsel %vm192, %v191, 0
    %v194 = vshrl.u32 %v193, 5
    %v195 = vand.u32 %v193, 31
    %v196 = vsub.s32 32, %v195
    %v197 = vshrl.u32 683565275, %v196
    %v198 = vshll.u32 683565275, %v195
    %v199 = vshrl.u32 2475754826, %v196
    %v200 = vor.u32 %v198, %v199
    %v201 = vshll.u32 2475754826, %v195
    %v202 = vshrl.u32 2131351028, %v196
    %v203 = vor.u32 %v201, %v202
    %v204 = vshll.u32 2131351028, %v195
    %v205 = vshrl.u32 2102212464, %v196
    %v206 = vor.u32 %v204, %v205
    %v207 = vshll.u32 2102212464, %v195
    %v208 = vshrl.u32 920167782, %v196
    %v209 = vor.u32 %v207, %v208
    %v210 = vshll.u32 920167782, %v195
    %v211 = vshrl.u32 1326507024, %v196
    %v212 = vor.u32 %v210, %v211
    %vm213 = vcmp.lt.s32.totalorder %v194, 1
    %vm214 = vcmp.lt.s32.totalorder %v194, 2
    %vm215 = vcmp.lt.s32.totalorder %v194, 3
    %vm216 = vcmp.lt.s32.totalorder %v194, 4
    %v217 = vsel %vm213, %v197, %v200
    %v218 = vsel %vm216, %v206, 2102212464
    %v219 = vsel %vm215, %v203, %v218
    %v220 = vsel %vm214, %v217, %v219
    %v221 = vsel %vm213, %v200, %v203
    %v222 = vsel %vm216, %v209, 920167782
    %v223 = vsel %vm215, %v206, %v222
    %v224 = vsel %vm214, %v221, %v223
    %v225 = vsel %vm213, %v203, %v206
    %v226 = vsel %vm216, %v212, 1326507024
    %v227 = vsel %vm215, %v209, %v226
    %v228 = vsel %vm214, %v225, %v227
    %v229 = vshll.u32 %v189, 8
    %v230 = vmul.u32.u64.compose %v229, %v228
    %v231 = vextract.low.u32 %v230
    %v232 = vextract.high.u32 %v230
    %v233 = vmul.u32.u64.compose %v229, %v224
    %v234 = vextract.low.u32 %v233
    %v235 = vextract.high.u32 %v233
    %v236 = vmul.u32 %v229, %v220
    %v237 = vadd.s32 %v232, %v234
    %vm238 = vc.u32 %v232, %v234
    %v239 = vadd.s32 %v235, 1
    %v240 = vsel %vm238, %v239, %v235
    %v241 = vadd.s32 %v236, %v240
    %v242 = vadd.s32 %v241, 536870912
    %v243 = vshrl.u32 %v242, 30
    %v244 = vshll.u32 %v243, 30
    %v245 = vsub.s32 %v241, %v244
    %vm246 = vcmp.lt.s32.totalorder %v245, 0
    %v247 = vsub.s32 0, %v245
    %v248 = vsel %vm246, %v247, %v245
    %v249 = vclz %v248
    %v250 = vsub.s32 %v249, 2
    %vm251 = vcmp.gt.s32.totalorder 0, %v250
    %v252 = vsel %vm251, 0, %v250
    %v253 = vsub.s32 32, %v252
    %v254 = vshll.u32 %v245, %v252
    %v255 = vshrl.u32 %v237, %v253
    %v256 = vor.u32 %v254, %v255
    %v257 = vsub.s32 4294967266, %v252
    %v258 = vadd.s32 %v257, 127
    %v259 = vshll.u32 %v258, 23
    %v260 = vor.u32 4788187, %v259
    %v261 = vand.u32 2147483647, %v260
    %v263 = vcvt.s32.f32 %v256
    %v264 = vmul.f32 %v263, %v261
    %v265 = vxor.u32 %v264, 2147483648
    %v266 = vsel %vm183, %v265, %v264
    %v267 = vsub.s32 4, %v243
    %v268 = vsel %vm183, %v267, %v243
    %v269 = vsel %vm182, %v77, %v266
    %v270 = vsel %vm182, 0, %v268
    %v271 = vcosq.f32.pop %v269
    %v272 = vsinq.f32.pop %v269
    %vm273 = vweird.f32 %v77
    %v274 = vadd.s32 %v270, 3
    %v275 = vand.u32 %v274, 3
    %vm276 = vcmp.lt.s32.totalorder %v275, 2
    %vm277 = vcmp.eq.s32.totalorder %v275, 0
    %v278 = vxor.u32 %v272, 2147483648
    %v279 = vsel %vm277, %v271, %v278
    %vm280 = vcmp.eq.s32.totalorder %v275, 2
    %v281 = vxor.u32 %v271, 2147483648
    %v282 = vsel %vm280, %v281, %v272
    %v283 = vsel %vm276, %v279, %v282
    %v284 = vsel %vm273, nan, %v283
    %v285 = vmul.f32 %v35, 0.05
    %v286 = vadd.f32 %v33, %v285
    %v287 = vmul.f32 %v70, 0.05
    %v288 = vadd.f32 %v35, %v287
    %v289 = vmul.f32 %v75, %v180
    %v290 = vmul.f32 %v76, %v284
    %v291 = vsub.f32 %v289, %v290
    %v292 = vmul.f32 %v76, %v180
    %v293 = vmul.f32 %v75, %v284
    %v294 = vadd.f32 %v292, %v293
    %v295 = vmul.f32 %v67, 0.05
    %v296 = vadd.f32 %v41, %v295
    %297 = vst [vmem:[#allocation7] sm:$0xff] %v286
    %s298 = scalar_lea.vmem [#allocation7], 8
    %299 = vst [vmem:[%s298] sm:$0xff] %v288
    %s300 = scalar_lea.vmem [#allocation7], 16
    %301 = vst [vmem:[%s300] sm:$0xff] %v291
    %s302 = scalar_lea.vmem [#allocation7], 24
    %303 = vst [vmem:[%s302] sm:$0xff] %v294
    %s304 = scalar_lea.vmem [#allocation7], 32
    %305 = vst [vmem:[%s304] sm:$0xff] %v296
    // Predicated region
    $region10: #{tpu_custom_call.1} parent=1 // pred_check
      _
    $region11: #{tpu_custom_call.1} parent=1 // pred_check_branch
      %307 = sbr.rel (0) target = $region13
    $region12: #{tpu_custom_call.1} parent=1 // pred_region
      %s309 = ssub.s32 640, 640
      %310 = vsyncadd [#allocation6], %s309
      %s311 = sshll.u32 [#allocation7], 4
      %s312 = int_to_ptr.vmem [resolvable:$true] %s311
      %317 = dma.vmem_to_hbm [thread:$0]  %s312, 640, %s2, [#allocation6], 128, 128, 8
    $region13: #{tpu_custom_call.1} parent=1 // pred_fallthru
      _
    // Predicated region
    $region14: #{tpu_custom_call.1} parent=1 // pred_check
      _
    $region15: #{tpu_custom_call.1} parent=1 // pred_check_branch
      %319 = sbr.rel (0) target = $region17
    $region16: #{tpu_custom_call.1} parent=1 // pred_region
      %320 = dma.done [#allocation6], 640
    $region17: #{tpu_custom_call.1} parent=1 // pred_fallthru
      _
    %321 = vsyncpa [#allocation5], 1
    %322 = vsyncpa [#allocation6], 1

</llo_original>
